<compile_context>
chip_gen: v7x
topology: tpu7x:2x2x1
jax: 0.10.0
libtpu: 0.0.40
codegen_flags: <defaults>
</compile_context>

<pallas_src>
import functools

import jax
import jax.numpy as jnp
from jax.experimental import pallas as pl
from jax.experimental.pallas import tpu as pltpu

# Layer sizes exactly as in the PyTorch module.
LAYER_DIMS = [81 * 3, 128, 64, 32, 16, 8, 2]  # 243 -> 128 -> 64 -> 32 -> 16 -> 8 -> 2
D_IN = LAYER_DIMS[0]
D_OUT = LAYER_DIMS[-1]
D_OUT_PAD = 128   # fc6 output padded 2 -> 128 so the store is lane-dense


def _round_up(x, m):
    return (x + m - 1) // m * m


def _mlp_kernel(x_ref,
                w1, b1, w2, b2, w3, b3, w4, b4, w5, b5, w6, b6,
                o_ref):
    """Fused 6x (Linear + ReLU) on one (tb, 243) batch tile.

    The f32 -> bf16 input cast happens here (fused with the tile DMA) instead
    of as a separate wrapper HBM pass. Matmuls run on the MXU in the weights'
    dtype (bf16) with f32 accumulation; bias add + ReLU happen in f32 on the
    VPU. All parameters (~170 KB) sit whole in VMEM. Output is stored bf16.
    """
    compute_dtype = w1.dtype

    def linear_relu(h, w_ref, b_ref, out_dtype):
        y = jnp.dot(h, w_ref[...], preferred_element_type=jnp.float32)
        y = jnp.maximum(y + b_ref[...], 0.0)
        return y.astype(out_dtype)

    h = x_ref[...].astype(compute_dtype)            # (tb, 243): in-kernel cast
    h = linear_relu(h, w1, b1, compute_dtype)       # K=243: Mosaic pads internally
    h = linear_relu(h, w2, b2, compute_dtype)
    h = linear_relu(h, w3, b3, compute_dtype)
    h = linear_relu(h, w4, b4, compute_dtype)
    h = linear_relu(h, w5, b5, compute_dtype)
    # Final layer also has ReLU, matching the PyTorch forward. w6/b6 are
    # zero-padded to 128 output lanes so this store is a full-lane vst.
    h = linear_relu(h, w6, b6, o_ref.dtype)
    o_ref[...] = h


def prepare_params(params, compute_dtype=jnp.bfloat16):
    """One-time parameter prep (hoisted out of the per-call hot path):
    pad fc6 to 128 output lanes, cast weights to bf16, keep biases f32.
    params: flat list [w1, b1, ..., w6, b6], w_i (in_i, out_i), b_i (1, out_i)."""
    w = list(params[0::2])
    b = list(params[1::2])
    w[5] = jnp.pad(w[5], ((0, 0), (0, D_OUT_PAD - D_OUT)))
    b[5] = jnp.pad(b[5], ((0, 0), (0, D_OUT_PAD - D_OUT)))
    w = [wi.astype(compute_dtype) for wi in w]      # bf16 weights: MXU-native
    b = [bi.astype(jnp.float32) for bi in b]        # f32 biases (post-accum add)
    return tuple(p for pair in zip(w, b) for p in pair)


@functools.partial(jax.jit, static_argnames=("tb",))
def eye_tracker_net_forward(x, prepared_params, tb=2048):
    """x: (B, 243) float32. prepared_params: output of prepare_params().
    Returns (B, 2) float32."""
    B, d_in = x.shape
    assert d_in == D_IN
    compute_dtype = jnp.dtype(prepared_params[0].dtype)
    itemsize_c = compute_dtype.itemsize
    sub = 16 if itemsize_c == 2 else 8              # bf16 packs 16 sublanes/vreg

    # ---- batch tiling (no explicit batch padding; ragged last block) ----
    b_round = _round_up(B, sub)
    tb_eff = max(sub, _round_up(min(tb, b_round), sub))
    if b_round >= 2 * sub:
        # Guarantee >= 2 grid steps so the ("parallel",) batch axis can split
        # across both TensorCores on v7x instead of collapsing to grid=1.
        tb_eff = min(tb_eff, _round_up(pl.cdiv(b_round, 2), sub))
    grid = (pl.cdiv(B, tb_eff),)

    # ---- specs ----
    x_spec = pl.BlockSpec((tb_eff, D_IN), lambda i: (i, 0))       # f32, full last dim
    o_spec = pl.BlockSpec((tb_eff, D_OUT_PAD), lambda i: (i, 0))  # bf16, lane-dense
    # Whole-array VMEM refs for the (tiny, grid-constant) weights/biases:
    # no blocking, no per-step double-buffering.
    param_specs = [pl.BlockSpec(memory_space=pltpu.MemorySpace.VMEM)] * len(prepared_params)

    # ---- scoped VMEM limit: generous headroom for large tiles, capped under
    #      v7x's 64 MiB physical VMEM ----
    lanes_in = _round_up(D_IN, 128)                 # VMEM lane-padded width of x tile
    vmem_est = (2 * tb_eff * lanes_in * 4           # x double-buffered (f32)
                + 2 * tb_eff * D_OUT_PAD * itemsize_c   # out double-buffered (bf16)
                + tb_eff * (lanes_in * itemsize_c + 2 * 128 * 4)  # live intermediates
                + (1 << 20))                        # params + slack
    vmem_limit = int(min(max(2 * vmem_est, 24 * 1024 * 1024), 48 * 1024 * 1024))

    # ---- advisory cost estimate for the XLA scheduler ----
    param_bytes = sum(int(p.size) * jnp.dtype(p.dtype).itemsize for p in prepared_params)
    layer_pairs = list(zip(LAYER_DIMS[:-1], LAYER_DIMS[1:-1] + [D_OUT_PAD]))
    flops = 2 * B * sum(k * n for k, n in layer_pairs)
    bytes_accessed = B * D_IN * 4 + B * D_OUT_PAD * itemsize_c + param_bytes

    out_padded = pl.pallas_call(
        _mlp_kernel,
        out_shape=jax.ShapeDtypeStruct((B, D_OUT_PAD), compute_dtype),
        grid=grid,
        in_specs=[x_spec] + param_specs,
        out_specs=o_spec,
        compiler_params=pltpu.CompilerParams(
            dimension_semantics=("parallel",),      # batch tiles shard across TCs
            vmem_limit_bytes=vmem_limit),
        cost_estimate=pl.CostEstimate(
            flops=flops, transcendentals=0, bytes_accessed=bytes_accessed),
    )(x, *prepared_params)

    return out_padded[:, :D_OUT].astype(jnp.float32)


def init_params(key):
    """Deterministic init mimicking PyTorch nn.Linear default:
    U(-1/sqrt(fan_in), 1/sqrt(fan_in)) for weight and bias.
    Weights returned as (in, out); biases as (1, out)."""
    params = []
    for li in range(len(LAYER_DIMS) - 1):
        fan_in, fan_out = LAYER_DIMS[li], LAYER_DIMS[li + 1]
        key, kw, kb = jax.random.split(key, 3)
        bound = 1.0 / jnp.sqrt(jnp.asarray(fan_in, jnp.float32))
        w = jax.random.uniform(kw, (fan_in, fan_out), jnp.float32, -bound, bound)
        b = jax.random.uniform(kb, (1, fan_out), jnp.float32, -bound, bound)
        params += [w, b]
    return params


def reference_forward(x, params, compute_dtype=jnp.bfloat16):
    """Pure-JAX reference mirroring the kernel's precision scheme
    (bf16 matmul inputs, f32 accumulation / bias / ReLU, bf16 final store)."""
    h = x.astype(compute_dtype)
    n_layers = len(LAYER_DIMS) - 1
    for li in range(n_layers):
        w = params[2 * li].astype(compute_dtype)
        bb = params[2 * li + 1].astype(jnp.float32)
        y = jnp.dot(h, w, preferred_element_type=jnp.float32) + bb
        h = jnp.maximum(y, 0.0)
        if li < n_layers - 1:
            h = h.astype(compute_dtype)
    return h.astype(compute_dtype).astype(jnp.float32)


if __name__ == "__main__":
    key = jax.random.PRNGKey(0)
    key, kx, kx2 = jax.random.split(key, 3)

    params = init_params(jax.random.PRNGKey(0))
    prepared = prepare_params(params)              # one-time pad + cast

    # Case 1: default tile (caps to half the batch -> grid = 2).
    B = 32
    x = jax.random.normal(kx, (B, D_IN), jnp.float32)
    ref = reference_forward(x, params)
    out = jax.block_until_ready(eye_tracker_net_forward(x, prepared))
    assert out.shape == (B, 2), out.shape
    assert jnp.allclose(out, ref, atol=1e-2, rtol=1e-2), "mismatch vs reference (default tb)"

    # Case 2: multi-step grid with a ragged last block (B not a tile multiple).
    B2 = 33
    x2 = jax.random.normal(kx2, (B2, D_IN), jnp.float32)
    ref2 = reference_forward(x2, params)
    out2 = jax.block_until_ready(eye_tracker_net_forward(x2, prepared, tb=16))
    assert out2.shape == (B2, 2), out2.shape
    assert jnp.allclose(out2, ref2, atol=1e-2, rtol=1e-2), "mismatch vs reference (tb=16)"

    print("KERNEL_OK")
</pallas_src>

<mosaic_0001>
module attributes {stable_mosaic.version = 11 : i64} {
  func.func @_mlp_kernel(%arg0: i32, %arg1: memref<16x243xf32, #tpu.memory_space<vmem>>, %arg2: memref<243x128xbf16, #tpu.memory_space<vmem>>, %arg3: memref<1x128xf32, #tpu.memory_space<vmem>>, %arg4: memref<128x64xbf16, #tpu.memory_space<vmem>>, %arg5: memref<1x64xf32, #tpu.memory_space<vmem>>, %arg6: memref<64x32xbf16, #tpu.memory_space<vmem>>, %arg7: memref<1x32xf32, #tpu.memory_space<vmem>>, %arg8: memref<32x16xbf16, #tpu.memory_space<vmem>>, %arg9: memref<1x16xf32, #tpu.memory_space<vmem>>, %arg10: memref<16x8xbf16, #tpu.memory_space<vmem>>, %arg11: memref<1x8xf32, #tpu.memory_space<vmem>>, %arg12: memref<8x128xbf16, #tpu.memory_space<vmem>>, %arg13: memref<1x128xf32, #tpu.memory_space<vmem>>, %arg14: memref<16x128xbf16, #tpu.memory_space<vmem>>) attributes {dimension_semantics = [#tpu.dimension_semantics<parallel>], iteration_bounds = array<i64: 2>, scalar_prefetch = 0 : i64, scratch_operands = 0 : i64, tpu.core_type = #tpu.core_type<tc>, window_params = [{transform_indices = @transform_0, window_bounds = array<i64: 16, 243>}, {pipeline_mode = #tpu.pipeline_mode<synchronous>, transform_indices = @transform_1, window_bounds = array<i64: 243, 128>}, {pipeline_mode = #tpu.pipeline_mode<synchronous>, transform_indices = @transform_2, window_bounds = array<i64: 1, 128>}, {pipeline_mode = #tpu.pipeline_mode<synchronous>, transform_indices = @transform_3, window_bounds = array<i64: 128, 64>}, {pipeline_mode = #tpu.pipeline_mode<synchronous>, transform_indices = @transform_4, window_bounds = array<i64: 1, 64>}, {pipeline_mode = #tpu.pipeline_mode<synchronous>, transform_indices = @transform_5, window_bounds = array<i64: 64, 32>}, {pipeline_mode = #tpu.pipeline_mode<synchronous>, transform_indices = @transform_6, window_bounds = array<i64: 1, 32>}, {pipeline_mode = #tpu.pipeline_mode<synchronous>, transform_indices = @transform_7, window_bounds = array<i64: 32, 16>}, {pipeline_mode = #tpu.pipeline_mode<synchronous>, transform_indices = @transform_8, window_bounds = array<i64: 1, 16>}, {pipeline_mode = #tpu.pipeline_mode<synchronous>, transform_indices = @transform_9, window_bounds = array<i64: 16, 8>}, {pipeline_mode = #tpu.pipeline_mode<synchronous>, transform_indices = @transform_10, window_bounds = array<i64: 1, 8>}, {pipeline_mode = #tpu.pipeline_mode<synchronous>, transform_indices = @transform_11, window_bounds = array<i64: 8, 128>}, {pipeline_mode = #tpu.pipeline_mode<synchronous>, transform_indices = @transform_12, window_bounds = array<i64: 1, 128>}, {transform_indices = @transform_13, window_bounds = array<i64: 16, 128>}]} {
    %c0 = arith.constant 0 : index
    %c0_0 = arith.constant 0 : index
    %0 = vector.load %arg1[%c0, %c0_0] : memref<16x243xf32, #tpu.memory_space<vmem>>, vector<16x243xf32>
    %1 = arith.truncf %0 : vector<16x243xf32> to vector<16x243xbf16>
    %c0_1 = arith.constant 0 : index
    %c0_2 = arith.constant 0 : index
    %2 = vector.load %arg2[%c0_1, %c0_2] : memref<243x128xbf16, #tpu.memory_space<vmem>>, vector<243x128xbf16>
    %cst = arith.constant dense<0.000000e+00> : vector<16x128xf32>
    %3 = tpu.matmul %1, %2, %cst {dimension_numbers = #tpu.dot_dimension_numbers<[1], [0], [0], [1], [0, 0, 1, 1], [], []>} : vector<16x243xbf16>, vector<243x128xbf16>, vector<16x128xf32> -> vector<16x128xf32>
    %c0_3 = arith.constant 0 : index
    %c0_4 = arith.constant 0 : index
    %4 = vector.load %arg3[%c0_3, %c0_4] : memref<1x128xf32, #tpu.memory_space<vmem>>, vector<1x128xf32>
    %5 = vector.broadcast %4 : vector<1x128xf32> to vector<16x128xf32>
    %6 = arith.addf %3, %5 : vector<16x128xf32>
    %cst_5 = arith.constant 0.000000e+00 : f32
    %7 = vector.broadcast %cst_5 : f32 to vector<16x128xf32>
    %8 = arith.maximumf %6, %7 : vector<16x128xf32>
    %9 = arith.truncf %8 : vector<16x128xf32> to vector<16x128xbf16>
    %c0_6 = arith.constant 0 : index
    %c0_7 = arith.constant 0 : index
    %10 = vector.load %arg4[%c0_6, %c0_7] : memref<128x64xbf16, #tpu.memory_space<vmem>>, vector<128x64xbf16>
    %cst_8 = arith.constant dense<0.000000e+00> : vector<16x64xf32>
    %11 = tpu.matmul %9, %10, %cst_8 {dimension_numbers = #tpu.dot_dimension_numbers<[1], [0], [0], [1], [0, 0, 1, 1], [], []>} : vector<16x128xbf16>, vector<128x64xbf16>, vector<16x64xf32> -> vector<16x64xf32>
    %c0_9 = arith.constant 0 : index
    %c0_10 = arith.constant 0 : index
    %12 = vector.load %arg5[%c0_9, %c0_10] : memref<1x64xf32, #tpu.memory_space<vmem>>, vector<1x64xf32>
    %13 = vector.broadcast %12 : vector<1x64xf32> to vector<16x64xf32>
    %14 = arith.addf %11, %13 : vector<16x64xf32>
    %cst_11 = arith.constant 0.000000e+00 : f32
    %15 = vector.broadcast %cst_11 : f32 to vector<16x64xf32>
    %16 = arith.maximumf %14, %15 : vector<16x64xf32>
    %17 = arith.truncf %16 : vector<16x64xf32> to vector<16x64xbf16>
    %c0_12 = arith.constant 0 : index
    %c0_13 = arith.constant 0 : index
    %18 = vector.load %arg6[%c0_12, %c0_13] : memref<64x32xbf16, #tpu.memory_space<vmem>>, vector<64x32xbf16>
    %cst_14 = arith.constant dense<0.000000e+00> : vector<16x32xf32>
    %19 = tpu.matmul %17, %18, %cst_14 {dimension_numbers = #tpu.dot_dimension_numbers<[1], [0], [0], [1], [0, 0, 1, 1], [], []>} : vector<16x64xbf16>, vector<64x32xbf16>, vector<16x32xf32> -> vector<16x32xf32>
    %c0_15 = arith.constant 0 : index
    %c0_16 = arith.constant 0 : index
    %20 = vector.load %arg7[%c0_15, %c0_16] : memref<1x32xf32, #tpu.memory_space<vmem>>, vector<1x32xf32>
    %21 = vector.broadcast %20 : vector<1x32xf32> to vector<16x32xf32>
    %22 = arith.addf %19, %21 : vector<16x32xf32>
    %cst_17 = arith.constant 0.000000e+00 : f32
    %23 = vector.broadcast %cst_17 : f32 to vector<16x32xf32>
    %24 = arith.maximumf %22, %23 : vector<16x32xf32>
    %25 = arith.truncf %24 : vector<16x32xf32> to vector<16x32xbf16>
    %c0_18 = arith.constant 0 : index
    %c0_19 = arith.constant 0 : index
    %26 = vector.load %arg8[%c0_18, %c0_19] : memref<32x16xbf16, #tpu.memory_space<vmem>>, vector<32x16xbf16>
    %cst_20 = arith.constant dense<0.000000e+00> : vector<16x16xf32>
    %27 = tpu.matmul %25, %26, %cst_20 {dimension_numbers = #tpu.dot_dimension_numbers<[1], [0], [0], [1], [0, 0, 1, 1], [], []>} : vector<16x32xbf16>, vector<32x16xbf16>, vector<16x16xf32> -> vector<16x16xf32>
    %c0_21 = arith.constant 0 : index
    %c0_22 = arith.constant 0 : index
    %28 = vector.load %arg9[%c0_21, %c0_22] : memref<1x16xf32, #tpu.memory_space<vmem>>, vector<1x16xf32>
    %29 = vector.broadcast %28 : vector<1x16xf32> to vector<16x16xf32>
    %30 = arith.addf %27, %29 : vector<16x16xf32>
    %cst_23 = arith.constant 0.000000e+00 : f32
    %31 = vector.broadcast %cst_23 : f32 to vector<16x16xf32>
    %32 = arith.maximumf %30, %31 : vector<16x16xf32>
    %33 = arith.truncf %32 : vector<16x16xf32> to vector<16x16xbf16>
    %c0_24 = arith.constant 0 : index
    %c0_25 = arith.constant 0 : index
    %34 = vector.load %arg10[%c0_24, %c0_25] : memref<16x8xbf16, #tpu.memory_space<vmem>>, vector<16x8xbf16>
    %cst_26 = arith.constant dense<0.000000e+00> : vector<16x8xf32>
    %35 = tpu.matmul %33, %34, %cst_26 {dimension_numbers = #tpu.dot_dimension_numbers<[1], [0], [0], [1], [0, 0, 1, 1], [], []>} : vector<16x16xbf16>, vector<16x8xbf16>, vector<16x8xf32> -> vector<16x8xf32>
    %c0_27 = arith.constant 0 : index
    %c0_28 = arith.constant 0 : index
    %36 = vector.load %arg11[%c0_27, %c0_28] : memref<1x8xf32, #tpu.memory_space<vmem>>, vector<1x8xf32>
    %37 = vector.broadcast %36 : vector<1x8xf32> to vector<16x8xf32>
    %38 = arith.addf %35, %37 : vector<16x8xf32>
    %cst_29 = arith.constant 0.000000e+00 : f32
    %39 = vector.broadcast %cst_29 : f32 to vector<16x8xf32>
    %40 = arith.maximumf %38, %39 : vector<16x8xf32>
    %41 = arith.truncf %40 : vector<16x8xf32> to vector<16x8xbf16>
    %c0_30 = arith.constant 0 : index
    %c0_31 = arith.constant 0 : index
    %42 = vector.load %arg12[%c0_30, %c0_31] : memref<8x128xbf16, #tpu.memory_space<vmem>>, vector<8x128xbf16>
    %cst_32 = arith.constant dense<0.000000e+00> : vector<16x128xf32>
    %43 = tpu.matmul %41, %42, %cst_32 {dimension_numbers = #tpu.dot_dimension_numbers<[1], [0], [0], [1], [0, 0, 1, 1], [], []>} : vector<16x8xbf16>, vector<8x128xbf16>, vector<16x128xf32> -> vector<16x128xf32>
    %c0_33 = arith.constant 0 : index
    %c0_34 = arith.constant 0 : index
    %44 = vector.load %arg13[%c0_33, %c0_34] : memref<1x128xf32, #tpu.memory_space<vmem>>, vector<1x128xf32>
    %45 = vector.broadcast %44 : vector<1x128xf32> to vector<16x128xf32>
    %46 = arith.addf %43, %45 : vector<16x128xf32>
    %cst_35 = arith.constant 0.000000e+00 : f32
    %47 = vector.broadcast %cst_35 : f32 to vector<16x128xf32>
    %48 = arith.maximumf %46, %47 : vector<16x128xf32>
    %49 = arith.truncf %48 : vector<16x128xf32> to vector<16x128xbf16>
    %c0_36 = arith.constant 0 : index
    %c0_37 = arith.constant 0 : index
    %50 = vector.load %arg14[%c0_36, %c0_37] : memref<16x128xbf16, #tpu.memory_space<vmem>>, vector<16x128xbf16>
    tpu.vector_store %arg14[%c0_36, %c0_37], %49 {strides = array<i32>} : memref<16x128xbf16, #tpu.memory_space<vmem>>, vector<16x128xbf16>,
    return
  }
  func.func @transform_0(%arg0: i32) -> (i32, i32) {
    %c0_i32 = arith.constant 0 : i32
    %c0_i32_0 = arith.constant 0 : i32
    return %arg0, %c0_i32 : i32, i32
  }
  func.func @transform_1(%arg0: i32) -> (i32, i32) {
    %c0_i32 = arith.constant 0 : i32
    %c0_i32_0 = arith.constant 0 : i32
    %c0_i32_1 = arith.constant 0 : i32
    return %c0_i32, %c0_i32_0 : i32, i32
  }
  func.func @transform_2(%arg0: i32) -> (i32, i32) {
    %c0_i32 = arith.constant 0 : i32
    %c0_i32_0 = arith.constant 0 : i32
    %c0_i32_1 = arith.constant 0 : i32
    return %c0_i32, %c0_i32_0 : i32, i32
  }
  func.func @transform_3(%arg0: i32) -> (i32, i32) {
    %c0_i32 = arith.constant 0 : i32
    %c0_i32_0 = arith.constant 0 : i32
    %c0_i32_1 = arith.constant 0 : i32
    return %c0_i32, %c0_i32_0 : i32, i32
  }
  func.func @transform_4(%arg0: i32) -> (i32, i32) {
    %c0_i32 = arith.constant 0 : i32
    %c0_i32_0 = arith.constant 0 : i32
    %c0_i32_1 = arith.constant 0 : i32
    return %c0_i32, %c0_i32_0 : i32, i32
  }
  func.func @transform_5(%arg0: i32) -> (i32, i32) {
    %c0_i32 = arith.constant 0 : i32
    %c0_i32_0 = arith.constant 0 : i32
    %c0_i32_1 = arith.constant 0 : i32
    return %c0_i32, %c0_i32_0 : i32, i32
  }
  func.func @transform_6(%arg0: i32) -> (i32, i32) {
    %c0_i32 = arith.constant 0 : i32
    %c0_i32_0 = arith.constant 0 : i32
    %c0_i32_1 = arith.constant 0 : i32
    return %c0_i32, %c0_i32_0 : i32, i32
  }
  func.func @transform_7(%arg0: i32) -> (i32, i32) {
    %c0_i32 = arith.constant 0 : i32
    %c0_i32_0 = arith.constant 0 : i32
    %c0_i32_1 = arith.constant 0 : i32
    return %c0_i32, %c0_i32_0 : i32, i32
  }
  func.func @transform_8(%arg0: i32) -> (i32, i32) {
    %c0_i32 = arith.constant 0 : i32
    %c0_i32_0 = arith.constant 0 : i32
    %c0_i32_1 = arith.constant 0 : i32
    return %c0_i32, %c0_i32_0 : i32, i32
  }
  func.func @transform_9(%arg0: i32) -> (i32, i32) {
    %c0_i32 = arith.constant 0 : i32
    %c0_i32_0 = arith.constant 0 : i32
    %c0_i32_1 = arith.constant 0 : i32
    return %c0_i32, %c0_i32_0 : i32, i32
  }
  func.func @transform_10(%arg0: i32) -> (i32, i32) {
    %c0_i32 = arith.constant 0 : i32
    %c0_i32_0 = arith.constant 0 : i32
    %c0_i32_1 = arith.constant 0 : i32
    return %c0_i32, %c0_i32_0 : i32, i32
  }
  func.func @transform_11(%arg0: i32) -> (i32, i32) {
    %c0_i32 = arith.constant 0 : i32
    %c0_i32_0 = arith.constant 0 : i32
    %c0_i32_1 = arith.constant 0 : i32
    return %c0_i32, %c0_i32_0 : i32, i32
  }
  func.func @transform_12(%arg0: i32) -> (i32, i32) {
    %c0_i32 = arith.constant 0 : i32
    %c0_i32_0 = arith.constant 0 : i32
    %c0_i32_1 = arith.constant 0 : i32
    return %c0_i32, %c0_i32_0 : i32, i32
  }
  func.func @transform_13(%arg0: i32) -> (i32, i32) {
    %c0_i32 = arith.constant 0 : i32
    %c0_i32_0 = arith.constant 0 : i32
    return %arg0, %c0_i32 : i32, i32
  }
}

</mosaic_0001>

<llo_original>
// kernel: eye_tracker_net_forward.1
$region0: #{eye_tracker_net_forward.1}
  #allocation0 [shape = 'u32[]', space=smem, size = 0x4, offset = 0x4, fixed_abs, tag = 'smem constant byte address 0x4 - core index']
  #allocation1 [shape = 'u32[144,128]{1,0:T(1,128)}', space=vmem, size = 0x12000, scoped, tag = 'internal scratch']
  %s0 = inlined_call_operand.hbm [shape: f32[32,243], index: 0, kind: input, shape index: {}]
  %s1 = inlined_call_operand.vmem [shape: bf16[243,128], index: 1, kind: input, shape index: {}]
  %s2 = inlined_call_operand.vmem [shape: f32[1,128], index: 2, kind: input, shape index: {}]
  %s3 = inlined_call_operand.vmem [shape: bf16[128,64], index: 3, kind: input, shape index: {}]
  %s4 = inlined_call_operand.vmem [shape: f32[1,64], index: 4, kind: input, shape index: {}]
  %s5 = inlined_call_operand.vmem [shape: bf16[64,32], index: 5, kind: input, shape index: {}]
  %s6 = inlined_call_operand.vmem [shape: f32[1,32], index: 6, kind: input, shape index: {}]
  %s7 = inlined_call_operand.vmem [shape: bf16[32,16], index: 7, kind: input, shape index: {}]
  %s8 = inlined_call_operand.vmem [shape: f32[1,16], index: 8, kind: input, shape index: {}]
  %s9 = inlined_call_operand.vmem [shape: bf16[16,8], index: 9, kind: input, shape index: {}]
  %s10 = inlined_call_operand.vmem [shape: f32[1,8], index: 10, kind: input, shape index: {}]
  %s11 = inlined_call_operand.vmem [shape: bf16[8,128], index: 11, kind: input, shape index: {}]
  %s12 = inlined_call_operand.vmem [shape: f32[1,128], index: 12, kind: input, shape index: {}]
  %s13 = inlined_call_operand.vmem [shape: bf16[32,128], index: 13, kind: output, shape index: {}]
  %s14 = sld [smem:[#allocation0]]
  $region89: #{eye_tracker_net_forward.1} parent=0
    _
  %s16 = ssub.s32 1, %s14
  %s17 = scalar_select 0, %s16, %s14
  $region1: #{eye_tracker_net_forward.1} parent=0
    #allocation2 [shape = 'u8[32768]{0}', space=vmem, size = 0x8000, scoped, tag = 'input window, operand 0']
    #allocation3 [shape = 's32[2]{0}', space=sflag, size = 0x8, scoped, tag = 'scoped memory for eye_tracker_net_forward.1']
    %18 = vsyncpa [#allocation3], 0
    %s19 = scalar_lea.sflag [#allocation3], 1
    %20 = vsyncpa %s19, 0
    loop: start=0, step=1, limit=4
    $region2: #{eye_tracker_net_forward.1} parent=1 // loop_pre_header
      _
    $region3: #{eye_tracker_net_forward.1} parent=1 // loop_header
      %s22 = sphi 0, %s26
      %p23 = scmp.ge.s32.totalorder %s22, 4
      %s32 = sphi 0, %s34
      %s35 = sphi 0, %s32
      %s36 = sphi 0, %s35
      %s52 = sphi 0, %s36
      %s56 = sphi 0, %s56
      %s58 = sphi 0, %s56
      %s59 = sphi 0, %s58
      %s73 = sphi 0, %s59
      %s77 = sphi 0, %s77
      %s79 = sphi 0, %s77
      %s80 = sphi 0, %s79
      %s94 = sphi 0, %s80
      %s98 = sphi 0, %s98
      %s100 = sphi 0, %s98
      %s101 = sphi 0, %s100
      %s115 = sphi 0, %s101
      %s119 = sphi 0, %s119
      %s121 = sphi 0, %s119
      %s122 = sphi 0, %s121
      %s136 = sphi 0, %s122
      %s140 = sphi 0, %s140
      %s142 = sphi 0, %s140
      %s143 = sphi 0, %s142
      %s157 = sphi 0, %s143
      %s161 = sphi 0, %s161
      %s163 = sphi 0, %s161
      %s164 = sphi 0, %s163
      %s178 = sphi 0, %s164
      %s182 = sphi 0, %s182
      %s184 = sphi 0, %s182
      %s185 = sphi 0, %s184
      %s199 = sphi 0, %s185
      %s203 = sphi 0, %s203
      %s205 = sphi 0, %s203
      %s206 = sphi 0, %s205
      %s220 = sphi 0, %s206
      %s224 = sphi 0, %s224
      %s226 = sphi 0, %s224
      %s227 = sphi 0, %s226
      %s241 = sphi 0, %s227
      %s245 = sphi 0, %s245
      %s247 = sphi 0, %s245
      %s248 = sphi 0, %s247
      %s262 = sphi 0, %s248
      %s266 = sphi 0, %s266
      %s268 = sphi 0, %s266
      %s269 = sphi 0, %s268
      %s283 = sphi 0, %s269
      %s287 = sphi 0, %s287
      %s289 = sphi 0, %s287
      %s290 = sphi 0, %s289
      %s304 = sphi 0, %s290
      %s310 = sphi 0, %s312
      %s313 = sphi 0, %s310
      %s314 = sphi 0, %s313
      %s330 = sphi 0, %s314
    $region4: #{eye_tracker_net_forward.1} parent=1 // loop_header_branch
      %25 = sbr.rel (%p23) target = $region8
    $region5: #{eye_tracker_net_forward.1} parent=1 // loop_body
      %s27 = ssub.s32 %s22, 1
      %s28 = ssub.s32 %s22, 2
      %s29 = sadd.s32 %s22, 1
      %s30 = ssub.s32 %s22, %s29
      %p31 = scmp.eq.s32.totalorder %s30, 0
      %s33 = sadd.s32 %s32, 1
      %s34 = scalar_select %p31, %s32, %s33
      %p37 = pneg %p31
      %p38 = scmp.eq.s32.totalorder %s22, 1
      %p39 = por %p37, %p38
      %p40 = scmp.ne.s32.totalorder %s32, %s35
      %p41 = scmp.eq.s32.totalorder %s22, 0
      %p42 = por %p40, %p41
      %p43 = scmp.ne.s32.totalorder %s32, %s35
      %p44 = scmp.eq.s32.totalorder %s27, 1
      %p45 = por %p43, %p44
      %p46 = scmp.ne.s32.totalorder %s35, %s36
      %p47 = scmp.eq.s32.totalorder %s27, 0
      %p48 = por %p46, %p47
      %p49 = scmp.ne.s32.totalorder %s35, %s36
      %p50 = scmp.eq.s32.totalorder %s28, 1
      %p51 = por %p49, %p50
      %p53 = scmp.ne.s32.totalorder %s36, %s52
      %p54 = scmp.eq.s32.totalorder %s28, 0
      %p55 = por %p53, %p54
      %s57 = sadd.s32 %s56, 1
      %p60 = scmp.eq.s32.totalorder %s22, 1
      %p61 = scmp.ne.s32.totalorder %s56, %s58
      %p62 = scmp.eq.s32.totalorder %s22, 0
      %p63 = por %p61, %p62
      %p64 = scmp.ne.s32.totalorder %s56, %s58
      %p65 = scmp.eq.s32.totalorder %s27, 1
      %p66 = por %p64, %p65
      %p67 = scmp.ne.s32.totalorder %s58, %s59
      %p68 = scmp.eq.s32.totalorder %s27, 0
      %p69 = por %p67, %p68
      %p70 = scmp.ne.s32.totalorder %s58, %s59
      %p71 = scmp.eq.s32.totalorder %s28, 1
      %p72 = por %p70, %p71
      %p74 = scmp.ne.s32.totalorder %s59, %s73
      %p75 = scmp.eq.s32.totalorder %s28, 0
      %p76 = por %p74, %p75
      %s78 = sadd.s32 %s77, 1
      %p81 = scmp.eq.s32.totalorder %s22, 1
      %p82 = scmp.ne.s32.totalorder %s77, %s79
      %p83 = scmp.eq.s32.totalorder %s22, 0
      %p84 = por %p82, %p83
      %p85 = scmp.ne.s32.totalorder %s77, %s79
      %p86 = scmp.eq.s32.totalorder %s27, 1
      %p87 = por %p85, %p86
      %p88 = scmp.ne.s32.totalorder %s79, %s80
      %p89 = scmp.eq.s32.totalorder %s27, 0
      %p90 = por %p88, %p89
      %p91 = scmp.ne.s32.totalorder %s79, %s80
      %p92 = scmp.eq.s32.totalorder %s28, 1
      %p93 = por %p91, %p92
      %p95 = scmp.ne.s32.totalorder %s80, %s94
      %p96 = scmp.eq.s32.totalorder %s28, 0
      %p97 = por %p95, %p96
      %s99 = sadd.s32 %s98, 1
      %p102 = scmp.eq.s32.totalorder %s22, 1
      %p103 = scmp.ne.s32.totalorder %s98, %s100
      %p104 = scmp.eq.s32.totalorder %s22, 0
      %p105 = por %p103, %p104
      %p106 = scmp.ne.s32.totalorder %s98, %s100
      %p107 = scmp.eq.s32.totalorder %s27, 1
      %p108 = por %p106, %p107
      %p109 = scmp.ne.s32.totalorder %s100, %s101
      %p110 = scmp.eq.s32.totalorder %s27, 0
      %p111 = por %p109, %p110
      %p112 = scmp.ne.s32.totalorder %s100, %s101
      %p113 = scmp.eq.s32.totalorder %s28, 1
      %p114 = por %p112, %p113
      %p116 = scmp.ne.s32.totalorder %s101, %s115
      %p117 = scmp.eq.s32.totalorder %s28, 0
      %p118 = por %p116, %p117
      %s120 = sadd.s32 %s119, 1
      %p123 = scmp.eq.s32.totalorder %s22, 1
      %p124 = scmp.ne.s32.totalorder %s119, %s121
      %p125 = scmp.eq.s32.totalorder %s22, 0
      %p126 = por %p124, %p125
      %p127 = scmp.ne.s32.totalorder %s119, %s121
      %p128 = scmp.eq.s32.totalorder %s27, 1
      %p129 = por %p127, %p128
      %p130 = scmp.ne.s32.totalorder %s121, %s122
      %p131 = scmp.eq.s32.totalorder %s27, 0
      %p132 = por %p130, %p131
      %p133 = scmp.ne.s32.totalorder %s121, %s122
      %p134 = scmp.eq.s32.totalorder %s28, 1
      %p135 = por %p133, %p134
      %p137 = scmp.ne.s32.totalorder %s122, %s136
      %p138 = scmp.eq.s32.totalorder %s28, 0
      %p139 = por %p137, %p138
      %s141 = sadd.s32 %s140, 1
      %p144 = scmp.eq.s32.totalorder %s22, 1
      %p145 = scmp.ne.s32.totalorder %s140, %s142
      %p146 = scmp.eq.s32.totalorder %s22, 0
      %p147 = por %p145, %p146
      %p148 = scmp.ne.s32.totalorder %s140, %s142
      %p149 = scmp.eq.s32.totalorder %s27, 1
      %p150 = por %p148, %p149
      %p151 = scmp.ne.s32.totalorder %s142, %s143
      %p152 = scmp.eq.s32.totalorder %s27, 0
      %p153 = por %p151, %p152
      %p154 = scmp.ne.s32.totalorder %s142, %s143
      %p155 = scmp.eq.s32.totalorder %s28, 1
      %p156 = por %p154, %p155
      %p158 = scmp.ne.s32.totalorder %s143, %s157
      %p159 = scmp.eq.s32.totalorder %s28, 0
      %p160 = por %p158, %p159
      %s162 = sadd.s32 %s161, 1
      %p165 = scmp.eq.s32.totalorder %s22, 1
      %p166 = scmp.ne.s32.totalorder %s161, %s163
      %p167 = scmp.eq.s32.totalorder %s22, 0
      %p168 = por %p166, %p167
      %p169 = scmp.ne.s32.totalorder %s161, %s163
      %p170 = scmp.eq.s32.totalorder %s27, 1
      %p171 = por %p169, %p170
      %p172 = scmp.ne.s32.totalorder %s163, %s164
      %p173 = scmp.eq.s32.totalorder %s27, 0
      %p174 = por %p172, %p173
      %p175 = scmp.ne.s32.totalorder %s163, %s164
      %p176 = scmp.eq.s32.totalorder %s28, 1
      %p177 = por %p175, %p176
      %p179 = scmp.ne.s32.totalorder %s164, %s178
      %p180 = scmp.eq.s32.totalorder %s28, 0
      %p181 = por %p179, %p180
      %s183 = sadd.s32 %s182, 1
      %p186 = scmp.eq.s32.totalorder %s22, 1
      %p187 = scmp.ne.s32.totalorder %s182, %s184
      %p188 = scmp.eq.s32.totalorder %s22, 0
      %p189 = por %p187, %p188
      %p190 = scmp.ne.s32.totalorder %s182, %s184
      %p191 = scmp.eq.s32.totalorder %s27, 1
      %p192 = por %p190, %p191
      %p193 = scmp.ne.s32.totalorder %s184, %s185
      %p194 = scmp.eq.s32.totalorder %s27, 0
      %p195 = por %p193, %p194
      %p196 = scmp.ne.s32.totalorder %s184, %s185
      %p197 = scmp.eq.s32.totalorder %s28, 1
      %p198 = por %p196, %p197
      %p200 = scmp.ne.s32.totalorder %s185, %s199
      %p201 = scmp.eq.s32.totalorder %s28, 0
      %p202 = por %p200, %p201
      %s204 = sadd.s32 %s203, 1
      %p207 = scmp.eq.s32.totalorder %s22, 1
      %p208 = scmp.ne.s32.totalorder %s203, %s205
      %p209 = scmp.eq.s32.totalorder %s22, 0
      %p210 = por %p208, %p209
      %p211 = scmp.ne.s32.totalorder %s203, %s205
      %p212 = scmp.eq.s32.totalorder %s27, 1
      %p213 = por %p211, %p212
      %p214 = scmp.ne.s32.totalorder %s205, %s206
      %p215 = scmp.eq.s32.totalorder %s27, 0
      %p216 = por %p214, %p215
      %p217 = scmp.ne.s32.totalorder %s205, %s206
      %p218 = scmp.eq.s32.totalorder %s28, 1
      %p219 = por %p217, %p218
      %p221 = scmp.ne.s32.totalorder %s206, %s220
      %p222 = scmp.eq.s32.totalorder %s28, 0
      %p223 = por %p221, %p222
      %s225 = sadd.s32 %s224, 1
      %p228 = scmp.eq.s32.totalorder %s22, 1
      %p229 = scmp.ne.s32.totalorder %s224, %s226
      %p230 = scmp.eq.s32.totalorder %s22, 0
      %p231 = por %p229, %p230
      %p232 = scmp.ne.s32.totalorder %s224, %s226
      %p233 = scmp.eq.s32.totalorder %s27, 1
      %p234 = por %p232, %p233
      %p235 = scmp.ne.s32.totalorder %s226, %s227
      %p236 = scmp.eq.s32.totalorder %s27, 0
      %p237 = por %p235, %p236
      %p238 = scmp.ne.s32.totalorder %s226, %s227
      %p239 = scmp.eq.s32.totalorder %s28, 1
      %p240 = por %p238, %p239
      %p242 = scmp.ne.s32.totalorder %s227, %s241
      %p243 = scmp.eq.s32.totalorder %s28, 0
      %p244 = por %p242, %p243
      %s246 = sadd.s32 %s245, 1
      %p249 = scmp.eq.s32.totalorder %s22, 1
      %p250 = scmp.ne.s32.totalorder %s245, %s247
      %p251 = scmp.eq.s32.totalorder %s22, 0
      %p252 = por %p250, %p251
      %p253 = scmp.ne.s32.totalorder %s245, %s247
      %p254 = scmp.eq.s32.totalorder %s27, 1
      %p255 = por %p253, %p254
      %p256 = scmp.ne.s32.totalorder %s247, %s248
      %p257 = scmp.eq.s32.totalorder %s27, 0
      %p258 = por %p256, %p257
      %p259 = scmp.ne.s32.totalorder %s247, %s248
      %p260 = scmp.eq.s32.totalorder %s28, 1
      %p261 = por %p259, %p260
      %p263 = scmp.ne.s32.totalorder %s248, %s262
      %p264 = scmp.eq.s32.totalorder %s28, 0
      %p265 = por %p263, %p264
      %s267 = sadd.s32 %s266, 1
      %p270 = scmp.eq.s32.totalorder %s22, 1
      %p271 = scmp.ne.s32.totalorder %s266, %s268
      %p272 = scmp.eq.s32.totalorder %s22, 0
      %p273 = por %p271, %p272
      %p274 = scmp.ne.s32.totalorder %s266, %s268
      %p275 = scmp.eq.s32.totalorder %s27, 1
      %p276 = por %p274, %p275
      %p277 = scmp.ne.s32.totalorder %s268, %s269
      %p278 = scmp.eq.s32.totalorder %s27, 0
      %p279 = por %p277, %p278
      %p280 = scmp.ne.s32.totalorder %s268, %s269
      %p281 = scmp.eq.s32.totalorder %s28, 1
      %p282 = por %p280, %p281
      %p284 = scmp.ne.s32.totalorder %s269, %s283
      %p285 = scmp.eq.s32.totalorder %s28, 0
      %p286 = por %p284, %p285
      %s288 = sadd.s32 %s287, 1
      %p291 = scmp.eq.s32.totalorder %s22, 1
      %p292 = scmp.ne.s32.totalorder %s287, %s289
      %p293 = scmp.eq.s32.totalorder %s22, 0
      %p294 = por %p292, %p293
      %p295 = scmp.ne.s32.totalorder %s287, %s289
      %p296 = scmp.eq.s32.totalorder %s27, 1
      %p297 = por %p295, %p296
      %p298 = scmp.ne.s32.totalorder %s289, %s290
      %p299 = scmp.eq.s32.totalorder %s27, 0
      %p300 = por %p298, %p299
      %p301 = scmp.ne.s32.totalorder %s289, %s290
      %p302 = scmp.eq.s32.totalorder %s28, 1
      %p303 = por %p301, %p302
      %p305 = scmp.ne.s32.totalorder %s290, %s304
      %p306 = scmp.eq.s32.totalorder %s28, 0
      %p307 = por %p305, %p306
      %s308 = ssub.s32 %s22, %s29
      %p309 = scmp.eq.s32.totalorder %s308, 0
      %s311 = sadd.s32 %s310, 1
      %s312 = scalar_select %p309, %s310, %s311
      %p315 = pneg %p309
      %p316 = scmp.eq.s32.totalorder %s22, 1
      %p317 = por %p315, %p316
      %p318 = scmp.ne.s32.totalorder %s310, %s313
      %p319 = scmp.eq.s32.totalorder %s22, 0
      %p320 = por %p318, %p319
      %p321 = scmp.ne.s32.totalorder %s310, %s313
      %p322 = scmp.eq.s32.totalorder %s27, 1
      %p323 = por %p321, %p322
      %p324 = scmp.ne.s32.totalorder %s313, %s314
      %p325 = scmp.eq.s32.totalorder %s27, 0
      %p326 = por %p324, %p325
      %p327 = scmp.ne.s32.totalorder %s313, %s314
      %p328 = scmp.eq.s32.totalorder %s28, 1
      %p329 = por %p327, %p328
      %p331 = scmp.ne.s32.totalorder %s314, %s330
      %p332 = scmp.eq.s32.totalorder %s28, 0
      %p333 = por %p331, %p332
      %p334 = scmp.le.s32.totalorder 1, %s22
      %p335 = scmp.lt.s32.totalorder %s22, 3
      %p336 = pnand %p334, %p335
      %p337 = pneg %p336
      // Predicated region
      $region9: #{eye_tracker_net_forward.1} parent=5 // pred_check
        _
      $region10: #{eye_tracker_net_forward.1} parent=5 // pred_check_branch
        %339 = sbr.rel (%p336) target = $region12
      $region11: #{eye_tracker_net_forward.1} parent=5 // pred_region
        %s340 = ssub.s32 %s22, 1
        // Predicated region
        $region13: #{eye_tracker_net_forward.1} parent=11 // pred_check
          %p341 = pneg %p69
        $region14: #{eye_tracker_net_forward.1} parent=11 // pred_check_branch
          %343 = sbr.rel (%p341) target = $region16
        $region15: #{eye_tracker_net_forward.1} parent=11 // pred_region
          _
        $region16: #{eye_tracker_net_forward.1} parent=11 // pred_fallthru
          _
        // Predicated region
        $region17: #{eye_tracker_net_forward.1} parent=11 // pred_check
          %p344 = pneg %p90
        $region18: #{eye_tracker_net_forward.1} parent=11 // pred_check_branch
          %346 = sbr.rel (%p344) target = $region20
        $region19: #{eye_tracker_net_forward.1} parent=11 // pred_region
          _
        $region20: #{eye_tracker_net_forward.1} parent=11 // pred_fallthru
          _
        // Predicated region
        $region21: #{eye_tracker_net_forward.1} parent=11 // pred_check
          %p347 = pneg %p111
        $region22: #{eye_tracker_net_forward.1} parent=11 // pred_check_branch
          %349 = sbr.rel (%p347) target = $region24
        $region23: #{eye_tracker_net_forward.1} parent=11 // pred_region
          _
        $region24: #{eye_tracker_net_forward.1} parent=11 // pred_fallthru
          _
        // Predicated region
        $region25: #{eye_tracker_net_forward.1} parent=11 // pred_check
          %p350 = pneg %p132
        $region26: #{eye_tracker_net_forward.1} parent=11 // pred_check_branch
          %352 = sbr.rel (%p350) target = $region28
        $region27: #{eye_tracker_net_forward.1} parent=11 // pred_region
          _
        $region28: #{eye_tracker_net_forward.1} parent=11 // pred_fallthru
          _
        // Predicated region
        $region29: #{eye_tracker_net_forward.1} parent=11 // pred_check
          %p353 = pneg %p153
        $region30: #{eye_tracker_net_forward.1} parent=11 // pred_check_branch
          %355 = sbr.rel (%p353) target = $region32
        $region31: #{eye_tracker_net_forward.1} parent=11 // pred_region
          _
        $region32: #{eye_tracker_net_forward.1} parent=11 // pred_fallthru
          _
        // Predicated region
        $region33: #{eye_tracker_net_forward.1} parent=11 // pred_check
          %p356 = pneg %p174
        $region34: #{eye_tracker_net_forward.1} parent=11 // pred_check_branch
          %358 = sbr.rel (%p356) target = $region36
        $region35: #{eye_tracker_net_forward.1} parent=11 // pred_region
          _
        $region36: #{eye_tracker_net_forward.1} parent=11 // pred_fallthru
          _
        // Predicated region
        $region37: #{eye_tracker_net_forward.1} parent=11 // pred_check
          %p359 = pneg %p195
        $region38: #{eye_tracker_net_forward.1} parent=11 // pred_check_branch
          %361 = sbr.rel (%p359) target = $region40
        $region39: #{eye_tracker_net_forward.1} parent=11 // pred_region
          _
        $region40: #{eye_tracker_net_forward.1} parent=11 // pred_fallthru
          _
        // Predicated region
        $region41: #{eye_tracker_net_forward.1} parent=11 // pred_check
          %p362 = pneg %p216
        $region42: #{eye_tracker_net_forward.1} parent=11 // pred_check_branch
          %364 = sbr.rel (%p362) target = $region44
        $region43: #{eye_tracker_net_forward.1} parent=11 // pred_region
          _
        $region44: #{eye_tracker_net_forward.1} parent=11 // pred_fallthru
          _
        // Predicated region
        $region45: #{eye_tracker_net_forward.1} parent=11 // pred_check
          %p365 = pneg %p237
        $region46: #{eye_tracker_net_forward.1} parent=11 // pred_check_branch
          %367 = sbr.rel (%p365) target = $region48
        $region47: #{eye_tracker_net_forward.1} parent=11 // pred_region
          _
        $region48: #{eye_tracker_net_forward.1} parent=11 // pred_fallthru
          _
        // Predicated region
        $region49: #{eye_tracker_net_forward.1} parent=11 // pred_check
          %p368 = pneg %p258
        $region50: #{eye_tracker_net_forward.1} parent=11 // pred_check_branch
          %370 = sbr.rel (%p368) target = $region52
        $region51: #{eye_tracker_net_forward.1} parent=11 // pred_region
          _
        $region52: #{eye_tracker_net_forward.1} parent=11 // pred_fallthru
          _
        // Predicated region
        $region53: #{eye_tracker_net_forward.1} parent=11 // pred_check
          %p371 = pneg %p279
        $region54: #{eye_tracker_net_forward.1} parent=11 // pred_check_branch
          %373 = sbr.rel (%p371) target = $region56
        $region55: #{eye_tracker_net_forward.1} parent=11 // pred_region
          _
        $region56: #{eye_tracker_net_forward.1} parent=11 // pred_fallthru
          _
        // Predicated region
        $region57: #{eye_tracker_net_forward.1} parent=11 // pred_check
          %p374 = pneg %p300
        $region58: #{eye_tracker_net_forward.1} parent=11 // pred_check_branch
          %376 = sbr.rel (%p374) target = $region60
        $region59: #{eye_tracker_net_forward.1} parent=11 // pred_region
          _
        $region60: #{eye_tracker_net_forward.1} parent=11 // pred_fallthru
          _
      $region12: #{eye_tracker_net_forward.1} parent=5 // pred_fallthru
        _
      %p377 = scmp.lt.s32.totalorder %s22, 2
      // Predicated region
      $region61: #{eye_tracker_net_forward.1} parent=5 // pred_check
        %p378 = pneg %p377
      $region62: #{eye_tracker_net_forward.1} parent=5 // pred_check_branch
        %380 = sbr.rel (%p378) target = $region64
      $region63: #{eye_tracker_net_forward.1} parent=5 // pred_region
        // Predicated region
        $region65: #{eye_tracker_net_forward.1} parent=63 // pred_check
          %p381 = pneg %p42
        $region66: #{eye_tracker_net_forward.1} parent=63 // pred_check_branch
          %383 = sbr.rel (%p381) target = $region68
        $region67: #{eye_tracker_net_forward.1} parent=63 // pred_region
          %s384 = sand.u32 %s32, 1
          %s385 = scalar_lea.sflag [#allocation3], %s384
          %s386 = sand.u32 %s32, 1
          %s387 = smul.addr %s386, 32
          %s388 = scalar_lea.vmem [#allocation2], %s387
          %s389 = smul.u32 2, %s22
          %s391 = ssub.s32 512, 512
          %392 = vsyncadd %s385, %s391
          %s393 = smul.addr %s389, 2
          %s394 = smul.addr %s393, 128
          %s395 = scalar_lea.hbm %s0, %s394
          %s396 = sshll.u32 %s388, 4
          %s397 = int_to_ptr.vmem [resolvable:$true] %s396
          %402 = dma.hbm_to_vmem [thread:$0]  %s395, 512, %s397, %s385, 256, 256, 16
        $region68: #{eye_tracker_net_forward.1} parent=63 // pred_fallthru
          _
      $region64: #{eye_tracker_net_forward.1} parent=5 // pred_fallthru
        _
      %p403 = scmp.le.s32.totalorder 1, %s22
      %p404 = scmp.lt.s32.totalorder %s22, 3
      %p405 = pnand %p403, %p404
      %p406 = pneg %p405
      // Predicated region
      $region69: #{eye_tracker_net_forward.1} parent=5 // pred_check
        _
      $region70: #{eye_tracker_net_forward.1} parent=5 // pred_check_branch
        %408 = sbr.rel (%p405) target = $region72
      $region71: #{eye_tracker_net_forward.1} parent=5 // pred_region
        %s409 = ssub.s32 %s22, 1
        %s410 = sand.u32 %s35, 1
        %s411 = scalar_lea.sflag [#allocation3], %s410
        %s412 = sand.u32 %s35, 1
        %s413 = smul.addr %s412, 32
        %s414 = scalar_lea.vmem [#allocation2], %s413
        // Predicated region
        $region73: #{eye_tracker_net_forward.1} parent=71 // pred_check
          %p415 = pneg %p48
        $region74: #{eye_tracker_net_forward.1} parent=71 // pred_check_branch
          %417 = sbr.rel (%p415) target = $region76
        $region75: #{eye_tracker_net_forward.1} parent=71 // pred_region
          %418 = dma.done %s411, 512
        $region76: #{eye_tracker_net_forward.1} parent=71 // pred_fallthru
          _
        %s419 = sand.u32 %s35, 1
        %s420 = scalar_lea.sflag [#allocation3], %s419
        %s421 = sand.u32 %s35, 1
        %s422 = smul.addr %s421, 32
        %s423 = scalar_lea.vmem [#allocation2], %s422
        %p424 = pneg %p48
        %p425 = pneg %p45
        %p426 = pneg %p69
        %p427 = pneg %p66
        %p428 = pneg %p90
        %p429 = pneg %p87
        %p430 = pneg %p111
        %p431 = pneg %p108
        %p432 = pneg %p132
        %p433 = pneg %p129
        %p434 = pneg %p153
        %p435 = pneg %p150
        %p436 = pneg %p174
        %p437 = pneg %p171
        %p438 = pneg %p195
        %p439 = pneg %p192
        %p440 = pneg %p216
        %p441 = pneg %p213
        %p442 = pneg %p237
        %p443 = pneg %p234
        %p444 = pneg %p258
        %p445 = pneg %p255
        %p446 = pneg %p279
        %p447 = pneg %p276
        %p448 = pneg %p300
        %p449 = pneg %p297
        %p450 = pneg %p326
        %p451 = pneg %p323
        %s452 = smul.u32 2, %s27
        %p453 = scmp.lt.s32.totalorder %s452, 3
        %s454 = scalar_select %p453, %s452, 3
        %s455 = smul.addr %s454, 4
        %s456 = scalar_lea.vmem %s13, %s455
        %s457 = smul.u32 2, %s27
        %s458 = smul.u32 2, %s27
        %p459 = scmp.lt.s32.totalorder %s458, 3
        %s460 = scalar_select %p459, %s458, 3
        %s461 = smul.addr %s460, 4
        %s462 = scalar_lea.vmem %s13, %s461
        %s463 = smul.u32 2, %s27
        %v465 = vld [vmem:[%s414] sm:$0xff]
        %v466 = vld [vmem:[%s414 + $0x8] sm:$0xff]
        %v467 = vld [vmem:[%s414 + $0x10] sm:$0xff]
        %v468 = vld [vmem:[%s414 + $0x18] sm:$0xff]
        %v469 = vpack.c.bf16 %v467, %v465
        %v470 = vpack.c.bf16 %v468, %v466
        %v471 = vld [vmem:[%s1] sm:$0xf]
        %v472 = vld [vmem:[%s1 + $0x4] sm:$0xf]
        %v473 = vld [vmem:[%s1 + $0x8] sm:$0xf]
        %v474 = vld [vmem:[%s1 + $0xc] sm:$0xf]
        %v475 = vld [vmem:[%s1 + $0x10] sm:$0xf]
        %v476 = vld [vmem:[%s1 + $0x14] sm:$0xf]
        %v477 = vld [vmem:[%s1 + $0x18] sm:$0xf]
        %v478 = vld [vmem:[%s1 + $0x1c] sm:$0xf]
        %v479 = vld [vmem:[%s1 + $0x20] sm:$0xf]
        %v480 = vld [vmem:[%s1 + $0x24] sm:$0xf]
        %v481 = vld [vmem:[%s1 + $0x28] sm:$0xf]
        %v482 = vld [vmem:[%s1 + $0x2c] sm:$0xf]
        %v483 = vld [vmem:[%s1 + $0x30] sm:$0xf]
        %v484 = vld [vmem:[%s1 + $0x34] sm:$0xf]
        %v485 = vld [vmem:[%s1 + $0x38] sm:$0xf]
        %v486 = vld [vmem:[%s1 + $0x3c] sm:$0xf]
        %v487 = vld [vmem:[%s1 + $0x40] sm:$0xf]
        %v488 = vld [vmem:[%s1 + $0x44] sm:$0xf]
        %v489 = vld [vmem:[%s1 + $0x48] sm:$0xf]
        %v490 = vld [vmem:[%s1 + $0x4c] sm:$0xf]
        %v491 = vld [vmem:[%s1 + $0x50] sm:$0xf]
        %v492 = vld [vmem:[%s1 + $0x54] sm:$0xf]
        %v493 = vld [vmem:[%s1 + $0x58] sm:$0xf]
        %v494 = vld [vmem:[%s1 + $0x5c] sm:$0xf]
        %v495 = vld [vmem:[%s1 + $0x60] sm:$0xf]
        %v496 = vld [vmem:[%s1 + $0x64] sm:$0xf]
        %v497 = vld [vmem:[%s1 + $0x68] sm:$0xf]
        %v498 = vld [vmem:[%s1 + $0x6c] sm:$0xf]
        %v499 = vld [vmem:[%s1 + $0x70] sm:$0xf]
        %v500 = vld [vmem:[%s1 + $0x74] sm:$0xf]
        %v501 = vld [vmem:[%s1 + $0x78] sm:$0x3]
        %v502 = vld [vmem:[%s2] sm:$0x1]
        %v504 = vlaneseq
        %v505 = vshrl.u32 %v504, 7
        %v506 = vsub.s32 0, %v505
        %v507 = vrot.slane %v502, %v506
        %v540 = vunpack.c.l.b16 %v471
        %v541 = vunpack.c.l.b16 %v472
        %v542 = vunpack.c.l.b16 %v473
        %v543 = vunpack.c.l.b16 %v474
        %v544 = vunpack.c.l.b16 %v475
        %v545 = vunpack.c.l.b16 %v476
        %v546 = vunpack.c.l.b16 %v477
        %v547 = vunpack.c.l.b16 %v478
        %v548 = vunpack.c.l.b16 %v479
        %v549 = vunpack.c.l.b16 %v480
        %v550 = vunpack.c.l.b16 %v481
        %v551 = vunpack.c.l.b16 %v482
        %v552 = vunpack.c.l.b16 %v483
        %v553 = vunpack.c.l.b16 %v484
        %v554 = vunpack.c.l.b16 %v485
        %v555 = vunpack.c.l.b16 %v486
        %v556 = vunpack.c.l.b16 %v487
        %v557 = vunpack.c.l.b16 %v488
        %v558 = vunpack.c.l.b16 %v489
        %v559 = vunpack.c.l.b16 %v490
        %v560 = vunpack.c.l.b16 %v491
        %v561 = vunpack.c.l.b16 %v492
        %v562 = vunpack.c.l.b16 %v493
        %v563 = vunpack.c.l.b16 %v494
        %v564 = vunpack.c.l.b16 %v495
        %v565 = vunpack.c.l.b16 %v496
        %v566 = vunpack.c.l.b16 %v497
        %v567 = vunpack.c.l.b16 %v498
        %v568 = vunpack.c.l.b16 %v499
        %v569 = vunpack.c.l.b16 %v500
        %v570 = vunpack.c.l.b16 %v501
        %v571 = vpack.c.b16 %v541, %v540
        %v572 = vpack.c.b16 %v543, %v542
        %v573 = vpack.c.b16 %v545, %v544
        %v574 = vpack.c.b16 %v547, %v546
        %v575 = vpack.c.b16 %v549, %v548
        %v576 = vpack.c.b16 %v551, %v550
        %v577 = vpack.c.b16 %v553, %v552
        %v578 = vpack.c.b16 %v555, %v554
        %v579 = vpack.c.b16 %v557, %v556
        %v580 = vpack.c.b16 %v559, %v558
        %v581 = vpack.c.b16 %v561, %v560
        %v582 = vpack.c.b16 %v563, %v562
        %v583 = vpack.c.b16 %v565, %v564
        %v584 = vpack.c.b16 %v567, %v566
        %v585 = vpack.c.b16 %v569, %v568
        %v586 = vpack.c.b16 %v570, %v570
        %vm602 = vcmask 941056
        %v604 = vsel %vm602, %v470, 0
        %vm606 = vcmask 1040384
        %vm607 = vcmask 1041408
        %v608 = vsel %vm606, 4294967295, 65535
        %v609 = vsel %vm607, %v608, 0
        %v611 = vand.u32 %v586, %v609
        %613 = vmatprep.subr.bf16.mxu0 0
        %614 = vmatpush1.bf16.msra.mxu0 %v571
        %615 = vmatprep.subr.bf16.mxu0 0
        %616 = vmatpush1.bf16.msra.mxu0 %v572
        %617 = vmatprep.subr.bf16.mxu0 0
        %618 = vmatpush1.bf16.msra.mxu0 %v573
        %619 = vmatprep.subr.bf16.mxu0 0
        %620 = vmatpush1.bf16.msra.mxu0 %v574
        %621 = vmatprep.subr.bf16.mxu0 0
        %622 = vmatpush1.bf16.msra.mxu0 %v575
        %623 = vmatprep.subr.bf16.mxu0 0
        %624 = vmatpush1.bf16.msra.mxu0 %v576
        %625 = vmatprep.subr.bf16.mxu0 0
        %626 = vmatpush1.bf16.msra.mxu0 %v577
        %627 = vmatprep.subr.bf16.mxu0 0
        %628 = vmatpush1.bf16.msra.mxu0 %v578
        %629 = vmatprep.subr.bf16.mxu0 0
        %630 = vmatpush1.bf16.msra.mxu0 %v579
        %631 = vmatprep.subr.bf16.mxu0 0
        %632 = vmatpush1.bf16.msra.mxu0 %v580
        %633 = vmatprep.subr.bf16.mxu0 0
        %634 = vmatpush1.bf16.msra.mxu0 %v581
        %635 = vmatprep.subr.bf16.mxu0 0
        %636 = vmatpush1.bf16.msra.mxu0 %v582
        %637 = vmatprep.subr.bf16.mxu0 0
        %638 = vmatpush1.bf16.msra.mxu0 %v583
        %639 = vmatprep.subr.bf16.mxu0 0
        %640 = vmatpush1.bf16.msra.mxu0 %v584
        %641 = vmatprep.subr.bf16.mxu0 0
        %642 = vmatpush1.bf16.msra.mxu0 %v585
        %643 = vmatprep.subr.bf16.mxu0 0
        %644 = vmatpush1.bf16.msra.mxu0 %v611
        %645 = vmatprep.mubr.bf16.mxu0 %v604
        %646 = vmatmul.mubr.bf16.gmra.mrb[0].mxu0 %v469
        %v647 = vpop.f32.mrb[0].mxu0
        %v648 = vadd.f32 %v507, %v647
        %v649 = vpop.f32.mrb[0].mxu0
        %v650 = vpop.f32.mrb[0].mxu0
        %v651 = vadd.f32 %v507, %v650
        %v652 = vpop.f32.mrb[0].mxu0
        %653 = vdwg.mxu0
        %v654 = vmax.f32 %v648, 0.0
        %v655 = vmax.f32 %v651, 0.0
        %v656 = vpack.c.bf16 %v655, %v654
        %v657 = vld [vmem:[%s3] sm:$0xf]
        %v658 = vld [vmem:[%s3 + $0x4] sm:$0xf]
        %v659 = vld [vmem:[%s3 + $0x8] sm:$0xf]
        %v660 = vld [vmem:[%s3 + $0xc] sm:$0xf]
        %v661 = vld [vmem:[%s3 + $0x10] sm:$0xf]
        %v662 = vld [vmem:[%s3 + $0x14] sm:$0xf]
        %v663 = vld [vmem:[%s3 + $0x18] sm:$0xf]
        %v664 = vld [vmem:[%s3 + $0x1c] sm:$0xf]
        %v665 = vld [vmem:[%s3 + $0x20] sm:$0xf]
        %v666 = vld [vmem:[%s3 + $0x24] sm:$0xf]
        %v667 = vld [vmem:[%s3 + $0x28] sm:$0xf]
        %v668 = vld [vmem:[%s3 + $0x2c] sm:$0xf]
        %v669 = vld [vmem:[%s3 + $0x30] sm:$0xf]
        %v670 = vld [vmem:[%s3 + $0x34] sm:$0xf]
        %v671 = vld [vmem:[%s3 + $0x38] sm:$0xf]
        %v672 = vld [vmem:[%s3 + $0x3c] sm:$0xf]
        %v673 = vld [vmem:[%s4] sm:$0x1]
        %v675 = vlaneseq
        %v676 = vshrl.u32 %v675, 7
        %v677 = vsub.s32 0, %v676
        %v678 = vrot.slane %v673, %v677
        %v696 = vunpack.c.l.b16 %v657
        %v697 = vunpack.c.l.b16 %v658
        %v698 = vunpack.c.l.b16 %v659
        %v699 = vunpack.c.l.b16 %v660
        %v700 = vunpack.c.l.b16 %v661
        %v701 = vunpack.c.l.b16 %v662
        %v702 = vunpack.c.l.b16 %v663
        %v703 = vunpack.c.l.b16 %v664
        %v704 = vunpack.c.l.b16 %v665
        %v705 = vunpack.c.l.b16 %v666
        %v706 = vunpack.c.l.b16 %v667
        %v707 = vunpack.c.l.b16 %v668
        %v708 = vunpack.c.l.b16 %v669
        %v709 = vunpack.c.l.b16 %v670
        %v710 = vunpack.c.l.b16 %v671
        %v711 = vunpack.c.l.b16 %v672
        %v712 = vpack.c.b16 %v697, %v696
        %v713 = vpack.c.b16 %v699, %v698
        %v714 = vpack.c.b16 %v701, %v700
        %v715 = vpack.c.b16 %v703, %v702
        %v716 = vpack.c.b16 %v705, %v704
        %v717 = vpack.c.b16 %v707, %v706
        %v718 = vpack.c.b16 %v709, %v708
        %v719 = vpack.c.b16 %v711, %v710
        %728 = vmatprep.subr.bf16.mxu0 0
        %729 = vmatpush1.bf16.msra.mxu0 %v712
        %730 = vmatprep.subr.bf16.mxu0 0
        %731 = vmatpush1.bf16.msra.mxu0 %v713
        %732 = vmatprep.subr.bf16.mxu0 0
        %733 = vmatpush1.bf16.msra.mxu0 %v714
        %734 = vmatprep.subr.bf16.mxu0 0
        %735 = vmatpush1.bf16.msra.mxu0 %v715
        %736 = vmatprep.subr.bf16.mxu0 0
        %737 = vmatpush1.bf16.msra.mxu0 %v716
        %738 = vmatprep.subr.bf16.mxu0 0
        %739 = vmatpush1.bf16.msra.mxu0 %v717
        %740 = vmatprep.subr.bf16.mxu0 0
        %741 = vmatpush1.bf16.msra.mxu0 %v718
        %742 = vmatprep.subr.bf16.mxu0 0
        %743 = vmatpush1.bf16.msra.mxu0 %v719
        %744 = vmatprep.subr.bf16.mxu0 0
        %745 = vmatpush1.bf16.msra.mxu0 0
        %746 = vmatprep.subr.bf16.mxu0 0
        %747 = vmatpush1.bf16.msra.mxu0 0
        %748 = vmatprep.subr.bf16.mxu0 0
        %749 = vmatpush1.bf16.msra.mxu0 0
        %750 = vmatprep.subr.bf16.mxu0 0
        %751 = vmatpush1.bf16.msra.mxu0 0
        %752 = vmatprep.subr.bf16.mxu0 0
        %753 = vmatpush1.bf16.msra.mxu0 0
        %754 = vmatprep.subr.bf16.mxu0 0
        %755 = vmatpush1.bf16.msra.mxu0 0
        %756 = vmatprep.subr.bf16.mxu0 0
        %757 = vmatpush1.bf16.msra.mxu0 0
        %758 = vmatprep.subr.bf16.mxu0 0
        %759 = vmatpush1.bf16.msra.mxu0 0
        %760 = vmatprep.mubr.bf16.mxu0 0
        %761 = vmatmul.mubr.bf16.gmra.mrb[0].mxu0 %v656
        %v762 = vpop.f32.mrb[0].mxu0
        %v763 = vadd.f32 %v678, %v762
        %v764 = vpop.f32.mrb[0].mxu0
        %v765 = vpop.f32.mrb[0].mxu0
        %v766 = vadd.f32 %v678, %v765
        %v767 = vpop.f32.mrb[0].mxu0
        %768 = vdwg.mxu0
        %v769 = vmax.f32 %v763, 0.0
        %v770 = vmax.f32 %v766, 0.0
        %v771 = vpack.c.bf16 %v770, %v769
        %v772 = vld [vmem:[%s5] sm:$0xf]
        %v773 = vld [vmem:[%s5 + $0x4] sm:$0xf]
        %v774 = vld [vmem:[%s5 + $0x8] sm:$0xf]
        %v775 = vld [vmem:[%s5 + $0xc] sm:$0xf]
        %v776 = vld [vmem:[%s5 + $0x10] sm:$0xf]
        %v777 = vld [vmem:[%s5 + $0x14] sm:$0xf]
        %v778 = vld [vmem:[%s5 + $0x18] sm:$0xf]
        %v779 = vld [vmem:[%s5 + $0x1c] sm:$0xf]
        %v780 = vld [vmem:[%s6] sm:$0x1]
        %v782 = vlaneseq
        %v783 = vshrl.u32 %v782, 7
        %v784 = vsub.s32 0, %v783
        %v785 = vrot.slane %v780, %v784
        %v795 = vunpack.c.l.b16 %v772
        %v796 = vunpack.c.l.b16 %v773
        %v797 = vunpack.c.l.b16 %v774
        %v798 = vunpack.c.l.b16 %v775
        %v799 = vunpack.c.l.b16 %v776
        %v800 = vunpack.c.l.b16 %v777
        %v801 = vunpack.c.l.b16 %v778
        %v802 = vunpack.c.l.b16 %v779
        %v803 = vpack.c.b16 %v796, %v795
        %v804 = vpack.c.b16 %v798, %v797
        %v805 = vpack.c.b16 %v800, %v799
        %v806 = vpack.c.b16 %v802, %v801
        %vm811 = vcmask 523264
        %v813 = vsel %vm811, %v771, 0
        %815 = vmatprep.subr.bf16.mxu0 0
        %816 = vmatpush1.bf16.msra.mxu0 %v803
        %817 = vmatprep.subr.bf16.mxu0 0
        %818 = vmatpush1.bf16.msra.mxu0 %v804
        %819 = vmatprep.subr.bf16.mxu0 0
        %820 = vmatpush1.bf16.msra.mxu0 %v805
        %821 = vmatprep.subr.bf16.mxu0 0
        %822 = vmatpush1.bf16.msra.mxu0 %v806
        %823 = vmatprep.subr.bf16.mxu0 0
        %824 = vmatpush1.bf16.msra.mxu0 0
        %825 = vmatprep.subr.bf16.mxu0 0
        %826 = vmatpush1.bf16.msra.mxu0 0
        %827 = vmatprep.subr.bf16.mxu0 0
        %828 = vmatpush1.bf16.msra.mxu0 0
        %829 = vmatprep.subr.bf16.mxu0 0
        %830 = vmatpush1.bf16.msra.mxu0 0
        %831 = vmatprep.subr.bf16.mxu0 0
        %832 = vmatpush1.bf16.msra.mxu0 0
        %833 = vmatprep.subr.bf16.mxu0 0
        %834 = vmatpush1.bf16.msra.mxu0 0
        %835 = vmatprep.subr.bf16.mxu0 0
        %836 = vmatpush1.bf16.msra.mxu0 0
        %837 = vmatprep.subr.bf16.mxu0 0
        %838 = vmatpush1.bf16.msra.mxu0 0
        %839 = vmatprep.subr.bf16.mxu0 0
        %840 = vmatpush1.bf16.msra.mxu0 0
        %841 = vmatprep.subr.bf16.mxu0 0
        %842 = vmatpush1.bf16.msra.mxu0 0
        %843 = vmatprep.subr.bf16.mxu0 0
        %844 = vmatpush1.bf16.msra.mxu0 0
        %845 = vmatprep.subr.bf16.mxu0 0
        %846 = vmatpush1.bf16.msra.mxu0 0
        %847 = vmatprep.mubr.bf16.mxu0 0
        %848 = vmatmul.mubr.bf16.gmra.mrb[0].mxu0 %v813
        %v849 = vpop.f32.mrb[0].mxu0
        %v850 = vadd.f32 %v785, %v849
        %v851 = vpop.f32.mrb[0].mxu0
        %v852 = vpop.f32.mrb[0].mxu0
        %v853 = vadd.f32 %v785, %v852
        %v854 = vpop.f32.mrb[0].mxu0
        %855 = vdwg.mxu0
        %v856 = vmax.f32 %v850, 0.0
        %v857 = vmax.f32 %v853, 0.0
        %v858 = vpack.c.bf16 %v857, %v856
        %v859 = vld [vmem:[%s7] sm:$0xf]
        %v860 = vld [vmem:[%s7 + $0x4] sm:$0xf]
        %v861 = vld [vmem:[%s7 + $0x8] sm:$0xf]
        %v862 = vld [vmem:[%s7 + $0xc] sm:$0xf]
        %v863 = vld [vmem:[%s8] sm:$0x1]
        %v865 = vlaneseq
        %v866 = vshrl.u32 %v865, 7
        %v867 = vsub.s32 0, %v866
        %v868 = vrot.slane %v863, %v867
        %v874 = vunpack.c.l.b16 %v859
        %v875 = vunpack.c.l.b16 %v860
        %v876 = vunpack.c.l.b16 %v861
        %v877 = vunpack.c.l.b16 %v862
        %v878 = vpack.c.b16 %v875, %v874
        %v879 = vpack.c.b16 %v877, %v876
        %vm882 = vcmask 261120
        %v884 = vsel %vm882, %v858, 0
        %886 = vmatprep.subr.bf16.mxu0 0
        %887 = vmatpush1.bf16.msra.mxu0 %v878
        %888 = vmatprep.subr.bf16.mxu0 0
        %889 = vmatpush1.bf16.msra.mxu0 %v879
        %890 = vmatprep.subr.bf16.mxu0 0
        %891 = vmatpush1.bf16.msra.mxu0 0
        %892 = vmatprep.subr.bf16.mxu0 0
        %893 = vmatpush1.bf16.msra.mxu0 0
        %894 = vmatprep.subr.bf16.mxu0 0
        %895 = vmatpush1.bf16.msra.mxu0 0
        %896 = vmatprep.subr.bf16.mxu0 0
        %897 = vmatpush1.bf16.msra.mxu0 0
        %898 = vmatprep.subr.bf16.mxu0 0
        %899 = vmatpush1.bf16.msra.mxu0 0
        %900 = vmatprep.subr.bf16.mxu0 0
        %901 = vmatpush1.bf16.msra.mxu0 0
        %902 = vmatprep.subr.bf16.mxu0 0
        %903 = vmatpush1.bf16.msra.mxu0 0
        %904 = vmatprep.subr.bf16.mxu0 0
        %905 = vmatpush1.bf16.msra.mxu0 0
        %906 = vmatprep.subr.bf16.mxu0 0
        %907 = vmatpush1.bf16.msra.mxu0 0
        %908 = vmatprep.subr.bf16.mxu0 0
        %909 = vmatpush1.bf16.msra.mxu0 0
        %910 = vmatprep.subr.bf16.mxu0 0
        %911 = vmatpush1.bf16.msra.mxu0 0
        %912 = vmatprep.subr.bf16.mxu0 0
        %913 = vmatpush1.bf16.msra.mxu0 0
        %914 = vmatprep.subr.bf16.mxu0 0
        %915 = vmatpush1.bf16.msra.mxu0 0
        %916 = vmatprep.subr.bf16.mxu0 0
        %917 = vmatpush1.bf16.msra.mxu0 0
        %918 = vmatprep.mubr.bf16.mxu0 0
        %919 = vmatmul.mubr.bf16.gmra.mrb[0].mxu0 %v884
        %v920 = vpop.f32.mrb[0].mxu0
        %v921 = vadd.f32 %v868, %v920
        %v922 = vpop.f32.mrb[0].mxu0
        %v923 = vpop.f32.mrb[0].mxu0
        %v924 = vadd.f32 %v868, %v923
        %v925 = vpop.f32.mrb[0].mxu0
        %926 = vdwg.mxu0
        %v927 = vmax.f32 %v921, 0.0
        %v928 = vmax.f32 %v924, 0.0
        %v929 = vpack.c.bf16 %v928, %v927
        %v930 = vld [vmem:[%s9] sm:$0xf]
        %v931 = vld [vmem:[%s9 + $0x4] sm:$0xf]
        %v932 = vld [vmem:[%s10] sm:$0x1]
        %v934 = vlaneseq
        %v935 = vshrl.u32 %v934, 7
        %v936 = vsub.s32 0, %v935
        %v937 = vrot.slane %v932, %v936
        %v941 = vunpack.c.l.b16 %v930
        %v942 = vunpack.c.l.b16 %v931
        %v943 = vpack.c.b16 %v942, %v941
        %vm945 = vcmask 130048
        %v947 = vsel %vm945, %v929, 0
        %949 = vmatprep.subr.bf16.mxu0 0
        %950 = vmatpush1.bf16.msra.mxu0 %v943
        %951 = vmatprep.subr.bf16.mxu0 0
        %952 = vmatpush1.bf16.msra.mxu0 0
        %953 = vmatprep.subr.bf16.mxu0 0
        %954 = vmatpush1.bf16.msra.mxu0 0
        %955 = vmatprep.subr.bf16.mxu0 0
        %956 = vmatpush1.bf16.msra.mxu0 0
        %957 = vmatprep.subr.bf16.mxu0 0
        %958 = vmatpush1.bf16.msra.mxu0 0
        %959 = vmatprep.subr.bf16.mxu0 0
        %960 = vmatpush1.bf16.msra.mxu0 0
        %961 = vmatprep.subr.bf16.mxu0 0
        %962 = vmatpush1.bf16.msra.mxu0 0
        %963 = vmatprep.subr.bf16.mxu0 0
        %964 = vmatpush1.bf16.msra.mxu0 0
        %965 = vmatprep.subr.bf16.mxu0 0
        %966 = vmatpush1.bf16.msra.mxu0 0
        %967 = vmatprep.subr.bf16.mxu0 0
        %968 = vmatpush1.bf16.msra.mxu0 0
        %969 = vmatprep.subr.bf16.mxu0 0
        %970 = vmatpush1.bf16.msra.mxu0 0
        %971 = vmatprep.subr.bf16.mxu0 0
        %972 = vmatpush1.bf16.msra.mxu0 0
        %973 = vmatprep.subr.bf16.mxu0 0
        %974 = vmatpush1.bf16.msra.mxu0 0
        %975 = vmatprep.subr.bf16.mxu0 0
        %976 = vmatpush1.bf16.msra.mxu0 0
        %977 = vmatprep.subr.bf16.mxu0 0
        %978 = vmatpush1.bf16.msra.mxu0 0
        %979 = vmatprep.subr.bf16.mxu0 0
        %980 = vmatpush1.bf16.msra.mxu0 0
        %981 = vmatprep.mubr.bf16.mxu0 0
        %982 = vmatmul.mubr.bf16.gmra.mrb[0].mxu0 %v947
        %v983 = vpop.f32.mrb[0].mxu0
        %v984 = vadd.f32 %v937, %v983
        %v985 = vpop.f32.mrb[0].mxu0
        %v986 = vpop.f32.mrb[0].mxu0
        %v987 = vadd.f32 %v937, %v986
        %v988 = vpop.f32.mrb[0].mxu0
        %989 = vdwg.mxu0
        %v990 = vmax.f32 %v984, 0.0
        %v991 = vmax.f32 %v987, 0.0
        %v992 = vpack.c.bf16 %v991, %v990
        %v993 = vld [vmem:[%s11] sm:$0xf]
        %v994 = vld [vmem:[%s12] sm:$0x1]
        %v996 = vlaneseq
        %v997 = vshrl.u32 %v996, 7
        %v998 = vsub.s32 0, %v997
        %v999 = vrot.slane %v994, %v998
        %vm1001 = vcmask 64512
        %v1003 = vsel %vm1001, %v992, 0
        %vm1005 = vcmask 1043456
        %v1007 = vsel %vm1005, %v993, 0
        %1009 = vmatprep.subr.bf16.mxu0 0
        %1010 = vmatpush1.bf16.msra.mxu0 %v1007
        %1011 = vmatprep.subr.bf16.mxu0 0
        %1012 = vmatpush1.bf16.msra.mxu0 0
        %1013 = vmatprep.subr.bf16.mxu0 0
        %1014 = vmatpush1.bf16.msra.mxu0 0
        %1015 = vmatprep.subr.bf16.mxu0 0
        %1016 = vmatpush1.bf16.msra.mxu0 0
        %1017 = vmatprep.subr.bf16.mxu0 0
        %1018 = vmatpush1.bf16.msra.mxu0 0
        %1019 = vmatprep.subr.bf16.mxu0 0
        %1020 = vmatpush1.bf16.msra.mxu0 0
        %1021 = vmatprep.subr.bf16.mxu0 0
        %1022 = vmatpush1.bf16.msra.mxu0 0
        %1023 = vmatprep.subr.bf16.mxu0 0
        %1024 = vmatpush1.bf16.msra.mxu0 0
        %1025 = vmatprep.subr.bf16.mxu0 0
        %1026 = vmatpush1.bf16.msra.mxu0 0
        %1027 = vmatprep.subr.bf16.mxu0 0
        %1028 = vmatpush1.bf16.msra.mxu0 0
        %1029 = vmatprep.subr.bf16.mxu0 0
        %1030 = vmatpush1.bf16.msra.mxu0 0
        %1031 = vmatprep.subr.bf16.mxu0 0
        %1032 = vmatpush1.bf16.msra.mxu0 0
        %1033 = vmatprep.subr.bf16.mxu0 0
        %1034 = vmatpush1.bf16.msra.mxu0 0
        %1035 = vmatprep.subr.bf16.mxu0 0
        %1036 = vmatpush1.bf16.msra.mxu0 0
        %1037 = vmatprep.subr.bf16.mxu0 0
        %1038 = vmatpush1.bf16.msra.mxu0 0
        %1039 = vmatprep.subr.bf16.mxu0 0
        %1040 = vmatpush1.bf16.msra.mxu0 0
        %1041 = vmatprep.mubr.bf16.mxu0 0
        %1042 = vmatmul.mubr.bf16.gmra.mrb[0].mxu0 %v1003
        %v1043 = vpop.f32.mrb[0].mxu0
        %v1044 = vadd.f32 %v999, %v1043
        %v1045 = vpop.f32.mrb[0].mxu0
        %v1046 = vpop.f32.mrb[0].mxu0
        %v1047 = vadd.f32 %v999, %v1046
        %v1048 = vpop.f32.mrb[0].mxu0
        %1049 = vdwg.mxu0
        %v1050 = vmax.f32 %v1044, 0.0
        %v1051 = vmax.f32 %v1047, 0.0
        %v1052 = vpack.c.bf16 %v1051, %v1050
        %v1054 = vunpack.c.l.b16 %v1052
        %v1055 = vunpack.c.h.b16 %v1052
        %v1056 = vpack.c.b16 %v1054, %v1054
        %v1057 = vpack.c.b16 %v1055, %v1055
        %1060 = vst [vmem:[%s462] sm:$0xf] %v1056
        %1061 = vst [vmem:[%s462 + $0x4] sm:$0xf] %v1057
        %s1062 = smul.u32 2, %s27
        %p1063 = scmp.lt.s32.totalorder %s1062, 3
        %s1064 = scalar_select %p1063, %s1062, 3
        %s1065 = smul.addr %s1064, 4
        %s1066 = scalar_lea.vmem %s13, %s1065
        // Predicated region
        $region77: #{eye_tracker_net_forward.1} parent=71 // pred_check
          %p1067 = pneg %p323
        $region78: #{eye_tracker_net_forward.1} parent=71 // pred_check_branch
          %1069 = sbr.rel (%p1067) target = $region80
        $region79: #{eye_tracker_net_forward.1} parent=71 // pred_region
          %s1070 = smul.u32 2, %s27
        $region80: #{eye_tracker_net_forward.1} parent=71 // pred_fallthru
          _
      $region72: #{eye_tracker_net_forward.1} parent=5 // pred_fallthru
        _
      %p1071 = scmp.le.s32.totalorder 2, %s22
      // Predicated region
      $region81: #{eye_tracker_net_forward.1} parent=5 // pred_check
        %p1072 = pneg %p1071
      $region82: #{eye_tracker_net_forward.1} parent=5 // pred_check_branch
        %1074 = sbr.rel (%p1072) target = $region84
      $region83: #{eye_tracker_net_forward.1} parent=5 // pred_region
        %s1075 = ssub.s32 %s22, 2
        // Predicated region
        $region85: #{eye_tracker_net_forward.1} parent=83 // pred_check
          %p1076 = pneg %p329
        $region86: #{eye_tracker_net_forward.1} parent=83 // pred_check_branch
          %1078 = sbr.rel (%p1076) target = $region88
        $region87: #{eye_tracker_net_forward.1} parent=83 // pred_region
          %s1079 = smul.u32 2, %s28
          %p1080 = scmp.lt.s32.totalorder %s1079, 3
          %s1081 = scalar_select %p1080, %s1079, 3
          %s1082 = smul.addr %s1081, 4
          %s1083 = scalar_lea.vmem %s13, %s1082
        $region88: #{eye_tracker_net_forward.1} parent=83 // pred_fallthru
          _
      $region84: #{eye_tracker_net_forward.1} parent=5 // pred_fallthru
        _
    $region6: #{eye_tracker_net_forward.1} parent=1 // loop_footer
      %s26 = sadd.s32 1, %s22
    $region7: #{eye_tracker_net_forward.1} parent=1 // loop_footer_branch
      %21 = sbr.rel target = $region3
    $region8: #{eye_tracker_net_forward.1} parent=1 // loop_exit
      _
    %1084 = vsyncpa [#allocation3], 1
    %s1085 = scalar_lea.sflag [#allocation3], 1
    %1086 = vsyncpa %s1085, 1

</llo_original>
